<compile_context>
chip_gen: v7x
topology: tpu7x:2x2x1
jax: 0.10.0
libtpu: 0.0.40
codegen_flags: <defaults>
</compile_context>

<pallas_src>
import math

import jax
import jax.numpy as jnp
from jax.experimental import pallas as pl
from jax.experimental.pallas import tpu as pltpu


# ------------------------------ helpers -------------------------------------

_HARD_FOOTPRINT_CAP = 40 << 20   # keep 2-deep pipelining viable on v7x (64 MiB/TC)


def _ru(x, m):
    return ((x + m - 1) // m) * m


def _vmem_limit_bytes(footprint):
    """Scoped-VMEM limit derived from the actual padded footprint."""
    limit = footprint + footprint // 4 + (2 << 20)
    limit = max(limit, 16 << 20)          # harmless floor (v5e default scoped VMEM)
    limit = min(limit, 48 << 20)          # safe on v7x's 64 MiB per TensorCore
    return int(max(limit, footprint + (1 << 20)))


def _pick_n_blk(N, n_fit):
    """Largest batch block that is a multiple of 8 (or == N) and divides N."""
    if n_fit >= N:
        return N
    d = (n_fit // 8) * 8
    while d >= 8:
        if N % d == 0:
            return d
        d -= 8
    # Nothing fits the budget: clamp to the smallest legal (multiple-of-8)
    # divisor of N rather than falling back to the whole batch.
    d = 8
    while d <= N:
        if N % d == 0:
            return d
        d += 8
    return N   # N has no multiple-of-8 divisor -> full batch dim (== N is legal)


def _choose_blocks_nchw(N, C, HW, itemsize, budget):
    sub = 16 if itemsize == 2 else 8
    hw_pad = _ru(HW, 128)

    if C % 128 == 0:
        c_cands = [c for c in range(128, C + 1, 128) if C % c == 0]
    else:
        c_cands = [C]   # full channel dim is always a legal block dim

    c_blk = min(c_cands)
    for c in sorted(c_cands, reverse=True):
        if 8 * _ru(c, sub) * hw_pad * itemsize <= budget:
            c_blk = c
            break

    per_n = _ru(c_blk, sub) * hw_pad * itemsize
    n_blk = _pick_n_blk(N, max(1, budget // per_n))
    return n_blk, c_blk


def _choose_blocks_nhwc(N, HW, C, itemsize, budget):
    sub = 16 if itemsize == 2 else 8

    if C % 128 == 0:
        c_cands = [c for c in range(128, C + 1, 128) if C % c == 0]
    else:
        c_cands = [C]

    hw_cands = [h for h in range(sub, HW + 1, sub) if HW % h == 0]
    if HW not in hw_cands:
        hw_cands.append(HW)

    def x_tile(n, h, c):
        return n * _ru(h, sub) * _ru(c, 128) * itemsize

    c_blk = max(c_cands)
    hw_blk = HW
    if x_tile(8, hw_blk, c_blk) > budget:
        for h in sorted(hw_cands, reverse=True):
            if x_tile(8, h, c_blk) <= budget:
                hw_blk = h
                break
        else:
            hw_blk = min(hw_cands)
        if x_tile(8, hw_blk, c_blk) > budget:
            for c in sorted(c_cands, reverse=True):
                if x_tile(8, hw_blk, c) <= budget:
                    c_blk = c
                    break
            else:
                c_blk = min(c_cands)

    per_n = _ru(hw_blk, sub) * _ru(c_blk, 128) * itemsize
    n_blk = _pick_n_blk(N, max(1, budget // per_n))
    return n_blk, hw_blk, c_blk


# ----------------------------- Pallas kernels -------------------------------

def _dct_pool_nchw_kernel(x_ref, w_ref, o_ref):
    # x_ref: (n_blk, c_blk, HW) VMEM tile
    # w_ref: (c_blk, HW)        VMEM tile (resident across the inner loop)
    # o_ref: (n_blk, c_blk)     VMEM tile
    x = x_ref[...].astype(jnp.float32)
    w = w_ref[...].astype(jnp.float32)
    prod = x * w[None, :, :]                                  # VPU broadcast-mul
    hw = prod.shape[-1]
    if hw % 128 == 0 and hw > 128:
        # Pre-fold lane-tiles with VPU adds (slices sit on lane-tile
        # boundaries -> no relayout) so only one 128-lane XLU reduce remains.
        acc = prod[..., 0:128]
        for off in range(128, hw, 128):
            acc = acc + prod[..., off:off + 128]
        o_ref[...] = jnp.sum(acc, axis=-1).astype(o_ref.dtype)
    else:
        o_ref[...] = jnp.sum(prod, axis=-1).astype(o_ref.dtype)


def _dct_pool_nhwc_kernel(x_ref, w_ref, o_ref, acc_ref):
    # x_ref: (n_blk, hw_blk, c_blk) VMEM tile, C on lanes / HW on sublanes
    # w_ref: (hw_blk, c_blk)        VMEM tile
    # o_ref: (n_blk, c_blk)         output tile (resident across the HW axis)
    # acc_ref: (n_blk, c_blk) f32 accumulator scratch
    k = pl.program_id(2)

    @pl.when(k == 0)
    def _init():
        acc_ref[...] = jnp.zeros_like(acc_ref)

    x = x_ref[...].astype(jnp.float32)
    w = w_ref[...].astype(jnp.float32)
    # Sublane reduction: mostly VPU vreg adds + one 8-sublane collapse.
    acc_ref[...] += jnp.sum(x * w[None, :, :], axis=1)

    @pl.when(k == pl.num_programs(2) - 1)
    def _finalize():
        o_ref[...] = acc_ref[...].astype(o_ref.dtype)


# ------------------------------- wrappers -----------------------------------

def multi_spectral_dct_layer_nhwc(x_nhwc, weight_hwc, *, out_dtype=jnp.float32,
                                  x_tile_budget_bytes=8 << 20):
    """Optimized entry point. x_nhwc: (N, H, W, C), weight_hwc: (H, W, C) -> (N, C).

    bf16 x / weight are accepted (halves HBM traffic); accumulation is f32."""
    N, H, W, C = x_nhwc.shape
    assert weight_hwc.shape == (H, W, C)
    HW = H * W

    x_flat = x_nhwc.reshape(N, HW, C)
    w_flat = weight_hwc.reshape(HW, C)
    itemsize = x_flat.dtype.itemsize
    w_itemsize = w_flat.dtype.itemsize
    out_itemsize = jnp.dtype(out_dtype).itemsize

    n_blk, hw_blk, c_blk = _choose_blocks_nhwc(N, HW, C, itemsize,
                                               x_tile_budget_bytes)

    x_sub = 16 if itemsize == 2 else 8
    w_sub = 16 if w_itemsize == 2 else 8
    x_tile = n_blk * _ru(hw_blk, x_sub) * _ru(c_blk, 128) * itemsize
    w_tile = _ru(hw_blk, w_sub) * _ru(c_blk, 128) * w_itemsize
    o_tile = _ru(n_blk, 8) * _ru(c_blk, 128) * out_itemsize
    acc_tile = _ru(n_blk, 8) * _ru(c_blk, 128) * 4
    footprint = 2 * x_tile + 2 * w_tile + 2 * o_tile + acc_tile

    nb, cb, kb = N // n_blk, C // c_blk, HW // hw_blk
    if cb >= nb:
        # C-blocks outermost: weight tile stays resident across the inner N loop.
        grid = (cb, nb, kb)
        x_map = lambda c, n, k: (n, k, c)
        w_map = lambda c, n, k: (k, c)
        o_map = lambda c, n, k: (n, c)
    else:
        # N-blocks outermost so v7x's two TensorCores both get work.
        grid = (nb, cb, kb)
        x_map = lambda n, c, k: (n, k, c)
        w_map = lambda n, c, k: (k, c)
        o_map = lambda n, c, k: (n, c)

    cost = pl.CostEstimate(
        flops=2 * N * C * HW,
        transcendentals=0,
        bytes_accessed=(x_flat.size * itemsize + w_flat.size * w_itemsize
                        + N * C * out_itemsize),
    )

    return pl.pallas_call(
        _dct_pool_nhwc_kernel,
        out_shape=jax.ShapeDtypeStruct((N, C), out_dtype),
        grid=grid,
        in_specs=[
            pl.BlockSpec((n_blk, hw_blk, c_blk), x_map),
            pl.BlockSpec((hw_blk, c_blk), w_map),
        ],
        out_specs=pl.BlockSpec((n_blk, c_blk), o_map),
        scratch_shapes=[pltpu.VMEM((n_blk, c_blk), jnp.float32)],
        compiler_params=pltpu.CompilerParams(
            dimension_semantics=("parallel", "parallel", "arbitrary"),
            vmem_limit_bytes=_vmem_limit_bytes(footprint)),
        cost_estimate=cost,
    )(x_flat, w_flat)


def multi_spectral_dct_layer(x_nchw, weight_chw, *, out_dtype=jnp.float32,
                             x_tile_budget_bytes=8 << 20):
    """PyTorch-layout entry point. x_nchw: (N, C, H, W), weight_chw: (C, H, W) -> (N, C).

    bf16 x / weight are accepted (halves HBM traffic); accumulation is f32."""
    N, C, H, W = x_nchw.shape
    assert weight_chw.shape == (C, H, W)
    HW = H * W

    itemsize = x_nchw.dtype.itemsize
    w_itemsize = weight_chw.dtype.itemsize
    out_itemsize = jnp.dtype(out_dtype).itemsize
    x_sub = 16 if itemsize == 2 else 8
    w_sub = 16 if w_itemsize == 2 else 8
    hw_pad = _ru(HW, 128)

    n_blk, c_blk = _choose_blocks_nchw(N, C, HW, itemsize, x_tile_budget_bytes)
    x_tile = n_blk * _ru(c_blk, x_sub) * hw_pad * itemsize
    w_tile = _ru(c_blk, w_sub) * hw_pad * w_itemsize
    o_tile = _ru(n_blk, 8) * _ru(c_blk, 128) * out_itemsize
    footprint = 2 * x_tile + 2 * w_tile + 2 * o_tile

    if footprint > _HARD_FOOTPRINT_CAP:
        # Huge spatial maps: the NCHW lane-reduce layout cannot tile HW (HW
        # would need to be a multiple of 128).  Transpose once and use the
        # NHWC kernel, which splits HW onto the "arbitrary" grid axis.
        x_nhwc = jnp.transpose(x_nchw, (0, 2, 3, 1))
        w_hwc = jnp.transpose(weight_chw, (1, 2, 0))
        return multi_spectral_dct_layer_nhwc(
            x_nhwc, w_hwc, out_dtype=out_dtype,
            x_tile_budget_bytes=x_tile_budget_bytes)

    x_flat = x_nchw.reshape(N, C, HW)
    w_flat = weight_chw.reshape(C, HW)

    cb, nb = C // c_blk, N // n_blk
    if cb >= nb:
        grid = (cb, nb)
        x_map = lambda c, n: (n, c, 0)
        w_map = lambda c, n: (c, 0)
        o_map = lambda c, n: (n, c)
    else:
        grid = (nb, cb)
        x_map = lambda n, c: (n, c, 0)
        w_map = lambda n, c: (c, 0)
        o_map = lambda n, c: (n, c)

    cost = pl.CostEstimate(
        flops=2 * N * C * HW,
        transcendentals=0,
        bytes_accessed=(x_flat.size * itemsize + w_flat.size * w_itemsize
                        + N * C * out_itemsize),
    )

    return pl.pallas_call(
        _dct_pool_nchw_kernel,
        out_shape=jax.ShapeDtypeStruct((N, C), out_dtype),
        grid=grid,
        in_specs=[
            pl.BlockSpec((n_blk, c_blk, HW), x_map),
            pl.BlockSpec((c_blk, HW), w_map),
        ],
        out_specs=pl.BlockSpec((n_blk, c_blk), o_map),
        compiler_params=pltpu.CompilerParams(
            dimension_semantics=("parallel", "parallel"),
            vmem_limit_bytes=_vmem_limit_bytes(footprint)),
        cost_estimate=cost,
    )(x_flat, w_flat)


# --------------------- deterministic DCT filter construction ----------------

def _build_filter(pos, freq, POS):
    result = math.cos(math.pi * freq * (pos + 0.5) / POS) / math.sqrt(POS)
    if freq == 0:
        return result
    return result * math.sqrt(2)


def get_dct_filter(tile_size_x, tile_size_y, mapper_x, mapper_y, channel):
    assert len(mapper_x) == len(mapper_y)
    num_freq = len(mapper_x)
    c_part = channel // num_freq
    dct = [[[0.0] * tile_size_y for _ in range(tile_size_x)]
           for _ in range(channel)]
    for i, (u_x, v_y) in enumerate(zip(mapper_x, mapper_y)):
        for t_x in range(tile_size_x):
            fx = _build_filter(t_x, u_x, tile_size_x)
            for t_y in range(tile_size_y):
                val = fx * _build_filter(t_y, v_y, tile_size_y)
                for c in range(i * c_part, (i + 1) * c_part):
                    dct[c][t_x][t_y] = val
    return jnp.asarray(dct, dtype=jnp.float32)


# --------------------------------- demo -------------------------------------

if __name__ == "__main__":
    key = jax.random.PRNGKey(0)
    k1, k2, k3, k4 = jax.random.split(key, 4)

    # 1) Small NCHW case consistent with the module: N=2, C=4, 16x16, 2 freqs.
    #    (HW = 256 is a multiple of 128 -> exercises the lane pre-fold path.)
    N, C, H, W = 2, 4, 16, 16
    weight = get_dct_filter(H, W, [0, 1], [0, 1], C)              # (C, H, W)
    x = jax.random.normal(k1, (N, C, H, W), dtype=jnp.float32)
    out = jax.block_until_ready(multi_spectral_dct_layer(x, weight))
    ref = jnp.sum(x * weight[None], axis=(2, 3))
    assert out.shape == (N, C) and out.dtype == jnp.float32
    assert jnp.allclose(out, ref, atol=1e-4, rtol=1e-4)

    # 2) fcanet-like NCHW case (N=16, C=256, 7x7) with a small tile budget so
    #    the multi-block grid, clamped n_blk=8 and lane-dense 128-channel
    #    output tiles are all exercised.
    N2, C2, H2, W2 = 16, 256, 7, 7
    weight2 = get_dct_filter(H2, W2, [0, 1, 2, 3], [0, 1, 2, 3], C2)
    x2 = jax.random.normal(k2, (N2, C2, H2, W2), dtype=jnp.float32)
    out2 = jax.block_until_ready(
        multi_spectral_dct_layer(x2, weight2, x_tile_budget_bytes=256 * 1024))
    ref2 = jnp.sum(x2 * weight2[None], axis=(2, 3))
    assert out2.shape == (N2, C2)
    assert jnp.allclose(out2, ref2, atol=1e-4, rtol=1e-4)

    # 3) Optimized NHWC entry point (C on lanes, HW on sublanes) with bf16 x.
    x3 = jax.random.normal(k3, (N2, H2, W2, C2),
                           dtype=jnp.float32).astype(jnp.bfloat16)
    weight3_hwc = jnp.transpose(weight2, (1, 2, 0))               # (H, W, C)
    out3 = jax.block_until_ready(
        multi_spectral_dct_layer_nhwc(x3, weight3_hwc))
    ref3 = jnp.sum(x3.astype(jnp.float32) * weight3_hwc[None], axis=(1, 2))
    assert out3.shape == (N2, C2) and out3.dtype == jnp.float32
    assert jnp.allclose(out3, ref3, atol=1e-3, rtol=1e-3)

    # 4) NHWC with HW split onto the "arbitrary" grid axis (accumulator +
    #    pl.when init/finalize path), forced by a tiny tile budget.
    N4, C4, H4, W4 = 8, 128, 8, 8
    weight4_hwc = jnp.transpose(get_dct_filter(H4, W4, [0, 1], [0, 1], C4),
                                (1, 2, 0))                        # (H, W, C)
    x4 = jax.random.normal(k4, (N4, H4, W4, C4), dtype=jnp.float32)
    out4 = jax.block_until_ready(
        multi_spectral_dct_layer_nhwc(x4, weight4_hwc,
                                      x_tile_budget_bytes=32 * 1024))
    ref4 = jnp.sum(x4 * weight4_hwc[None], axis=(1, 2))
    assert out4.shape == (N4, C4)
    assert jnp.allclose(out4, ref4, atol=1e-4, rtol=1e-4)

    print("KERNEL_OK")
</pallas_src>

<mosaic_0001>
module attributes {stable_mosaic.version = 11 : i64} {
  func.func @_dct_pool_nchw_kernel(%arg0: i32, %arg1: i32, %arg2: memref<2x4x256xf32, #tpu.memory_space<vmem>>, %arg3: memref<4x256xf32, #tpu.memory_space<vmem>>, %arg4: memref<2x4xf32, #tpu.memory_space<vmem>>) attributes {dimension_semantics = [#tpu.dimension_semantics<parallel>, #tpu.dimension_semantics<parallel>], iteration_bounds = array<i64: 1, 1>, scalar_prefetch = 0 : i64, scratch_operands = 0 : i64, tpu.core_type = #tpu.core_type<tc>, window_params = [{transform_indices = @transform_0, window_bounds = array<i64: 2, 4, 256>}, {transform_indices = @transform_1, window_bounds = array<i64: 4, 256>}, {transform_indices = @transform_2, window_bounds = array<i64: 2, 4>}]} {
    %c0 = arith.constant 0 : index
    %c0_0 = arith.constant 0 : index
    %c0_1 = arith.constant 0 : index
    %0 = vector.load %arg2[%c0, %c0_0, %c0_1] : memref<2x4x256xf32, #tpu.memory_space<vmem>>, vector<2x4x256xf32>
    %c0_2 = arith.constant 0 : index
    %c0_3 = arith.constant 0 : index
    %1 = vector.load %arg3[%c0_2, %c0_3] : memref<4x256xf32, #tpu.memory_space<vmem>>, vector<4x256xf32>
    %2 = vector.shape_cast %1 : vector<4x256xf32> to vector<1x4x256xf32>
    %3 = vector.broadcast %2 : vector<1x4x256xf32> to vector<2x4x256xf32>
    %4 = arith.mulf %0, %3 : vector<2x4x256xf32>
    %5 = vector.extract_strided_slice %4 {offsets = [0, 0, 0], sizes = [2, 4, 128], strides = [1, 1, 1]} : vector<2x4x256xf32> to vector<2x4x128xf32>
    %6 = vector.extract_strided_slice %4 {offsets = [0, 0, 128], sizes = [2, 4, 128], strides = [1, 1, 1]} : vector<2x4x256xf32> to vector<2x4x128xf32>
    %7 = arith.addf %5, %6 : vector<2x4x128xf32>
    %cst = arith.constant dense<0.000000e+00> : vector<2x4xf32>
    %8 = vector.multi_reduction <add>, %7, %cst [2] : vector<2x4x128xf32> to vector<2x4xf32>
    %c0_4 = arith.constant 0 : index
    %c0_5 = arith.constant 0 : index
    %9 = vector.load %arg4[%c0_4, %c0_5] : memref<2x4xf32, #tpu.memory_space<vmem>>, vector<2x4xf32>
    tpu.vector_store %arg4[%c0_4, %c0_5], %8 {strides = array<i32>} : memref<2x4xf32, #tpu.memory_space<vmem>>, vector<2x4xf32>,
    return
  }
  func.func @transform_0(%arg0: i32, %arg1: i32) -> (i32, i32, i32) {
    %c0_i32 = arith.constant 0 : i32
    %c0_i32_0 = arith.constant 0 : i32
    return %arg1, %arg0, %c0_i32 : i32, i32, i32
  }
  func.func @transform_1(%arg0: i32, %arg1: i32) -> (i32, i32) {
    %c0_i32 = arith.constant 0 : i32
    %c0_i32_0 = arith.constant 0 : i32
    return %arg0, %c0_i32 : i32, i32
  }
  func.func @transform_2(%arg0: i32, %arg1: i32) -> (i32, i32) {
    %c0_i32 = arith.constant 0 : i32
    return %arg1, %arg0 : i32, i32
  }
}

</mosaic_0001>

<llo_original>
// kernel: tpu_custom_call.1
$region0: #{tpu_custom_call.1}
  #allocation0 [shape = 'u32[]', space=smem, size = 0x4, offset = 0x4, fixed_abs, tag = 'smem constant byte address 0x4 - core index']
  #allocation1 [shape = 'u32[144,128]{1,0:T(1,128)}', space=vmem, size = 0x12000, scoped, tag = 'internal scratch']
  %s0 = inlined_call_operand.hbm [shape: f32[2,4,256], index: 0, kind: input, shape index: {}]
  %s1 = inlined_call_operand.hbm [shape: f32[4,256], index: 1, kind: input, shape index: {}]
  %s2 = inlined_call_operand.hbm [shape: f32[2,4], index: 2, kind: output, shape index: {}]
  %s3 = sld [smem:[#allocation0]]
  $region26: #{tpu_custom_call.1} parent=0
    _
  %s5 = ssub.s32 1, %s3
  %s6 = scalar_select 0, %s5, %s3
  $region1: #{tpu_custom_call.1} parent=0
    #allocation2 [shape = 'u8[8192]{0}', space=vmem, size = 0x2000, scoped, tag = 'input window, operand 0, single buffered']
    #allocation3 [shape = 's32[1]{0}', space=sflag, size = 0x4, scoped, tag = 'scoped memory for tpu_custom_call.1']
    #allocation4 [shape = 's32[1]{0}', space=sflag, size = 0x4, scoped, tag = 'scoped memory for tpu_custom_call.1']
    #allocation5 [shape = 'u8[4096]{0}', space=vmem, size = 0x1000, scoped, tag = 'input window, operand 1, single buffered']
    #allocation6 [shape = 's32[1]{0}', space=sflag, size = 0x4, scoped, tag = 'scoped memory for tpu_custom_call.1']
    #allocation7 [shape = 'u8[1024]{0}', space=vmem, size = 0x400, scoped, tag = 'output window, operand 0, single buffered']
    %7 = vsyncpa [#allocation3], 0
    %8 = vsyncpa [#allocation6], 0
    %9 = vsyncpa [#allocation4], 0
    // Predicated region
    $region2: #{tpu_custom_call.1} parent=1 // pred_check
      _
    $region3: #{tpu_custom_call.1} parent=1 // pred_check_branch
      %11 = sbr.rel (0) target = $region5
    $region4: #{tpu_custom_call.1} parent=1 // pred_region
      %s13 = ssub.s32 256, 256
      %14 = vsyncadd [#allocation3], %s13
      %s15 = sshll.u32 [#allocation2], 4
      %s16 = int_to_ptr.vmem [resolvable:$true] %s15
      %21 = dma.hbm_to_vmem [thread:$0]  %s0, 256, %s16, [#allocation3], 128, 128, 8
    $region5: #{tpu_custom_call.1} parent=1 // pred_fallthru
      _
    // Predicated region
    $region6: #{tpu_custom_call.1} parent=1 // pred_check
      _
    $region7: #{tpu_custom_call.1} parent=1 // pred_check_branch
      %23 = sbr.rel (0) target = $region9
    $region8: #{tpu_custom_call.1} parent=1 // pred_region
      %s25 = ssub.s32 128, 128
      %26 = vsyncadd [#allocation6], %s25
      %s28 = sshll.u32 [#allocation5], 4
      %s29 = int_to_ptr.vmem [resolvable:$true] %s28
      %31 = dma.hbm_to_vmem [thread:$0]  %s1, 128, %s29, [#allocation6]
    $region9: #{tpu_custom_call.1} parent=1 // pred_fallthru
      _
    // Predicated region
    $region10: #{tpu_custom_call.1} parent=1 // pred_check
      _
    $region11: #{tpu_custom_call.1} parent=1 // pred_check_branch
      %33 = sbr.rel (0) target = $region13
    $region12: #{tpu_custom_call.1} parent=1 // pred_region
      %34 = dma.done [#allocation3], 256
    $region13: #{tpu_custom_call.1} parent=1 // pred_fallthru
      _
    // Predicated region
    $region14: #{tpu_custom_call.1} parent=1 // pred_check
      _
    $region15: #{tpu_custom_call.1} parent=1 // pred_check_branch
      %36 = sbr.rel (0) target = $region17
    $region16: #{tpu_custom_call.1} parent=1 // pred_region
      %37 = dma.done [#allocation6], 128
    $region17: #{tpu_custom_call.1} parent=1 // pred_fallthru
      _
    %v38 = vld [vmem:[#allocation2] sm:$0xff]
    %v39 = vld [vmem:[#allocation2 + $0x8] sm:$0xff]
    %v40 = vld [vmem:[#allocation5] sm:$0xff]
    %v41 = vmul.f32 %v38, %v40
    %v42 = vmul.f32 %v39, %v40
    %v45 = vrot.slane %v41, 4
    %v46 = vrot.slane %v42, 4
    %v49 = vadd.f32 %v41, %v45
    %v50 = vadd.f32 %v42, %v46
    %vm51 = vcmask 1043456
    %v52 = vsel %vm51, %v49, 0.0
    %53 = vadd.xlane.f32.xlu0 %v52
    %v54 = vpop.xlane.xlu0 %53
    %v55 = vsel %vm51, %v50, 0.0
    %56 = vadd.xlane.f32.xlu0 %v55
    %v57 = vpop.xlane.xlu0 %56
    %v60 = vlaneseq
    %v61 = vand.u32 %v60, 127
    %v62 = vlaneseq
    %v63 = vshrl.u32 %v62, 7
    %v64 = vsub.s32 %v61, %v63
    %v65 = vrot.slane %v54, %v64
    %v66 = vlaneseq
    %v67 = vshrl.u32 %v66, 7
    %v68 = vsub.s32 %v61, %v67
    %v69 = vrot.slane %v57, %v68
    %vm70 = vcmask 1041409
    %v71 = vsel %vm70, %v69, %v65
    %vm73 = vcmask 25600
    %74 = vst.msk [vmem:[#allocation7] sm:$0x3] %vm73, %v71
    // Predicated region
    $region18: #{tpu_custom_call.1} parent=1 // pred_check
      _
    $region19: #{tpu_custom_call.1} parent=1 // pred_check_branch
      %76 = sbr.rel (0) target = $region21
    $region20: #{tpu_custom_call.1} parent=1 // pred_region
      %s78 = ssub.s32 32, 32
      %79 = vsyncadd [#allocation4], %s78
      %s81 = sshll.u32 [#allocation7], 4
      %s82 = int_to_ptr.vmem [resolvable:$true] %s81
      %84 = dma.vmem_to_hbm [thread:$0]  %s82, 32, %s2, [#allocation4]
    $region21: #{tpu_custom_call.1} parent=1 // pred_fallthru
      _
    // Predicated region
    $region22: #{tpu_custom_call.1} parent=1 // pred_check
      _
    $region23: #{tpu_custom_call.1} parent=1 // pred_check_branch
      %86 = sbr.rel (0) target = $region25
    $region24: #{tpu_custom_call.1} parent=1 // pred_region
      %87 = dma.done [#allocation4], 32
    $region25: #{tpu_custom_call.1} parent=1 // pred_fallthru
      _
    %88 = vsyncpa [#allocation3], 1
    %89 = vsyncpa [#allocation6], 1
    %90 = vsyncpa [#allocation4], 1

</llo_original>
